<compile_context>
chip_gen: v7x
topology: tpu7x:2x2x1
jax: 0.10.0
libtpu: 0.0.40
codegen_flags: <defaults>
</compile_context>

<pallas_src>
import functools

import jax
import jax.numpy as jnp
from jax import lax
from jax.experimental import pallas as pl
from jax.experimental.pallas import tpu as pltpu


def _channel_attention_kernel(x_ref, w1t_ref, w2t_ref, out_ref, sum_acc, max_acc, *,
                              hw_total, tile_hw, lane_block, grid_hw, block_n):
    # x_ref:    (block_n, C, tile_hw) -- HW on lanes, native dtype
    # w1t_ref:  (C, C_mid)   w2t_ref: (C_mid, C)   (native dtype)
    # out_ref:  (block_n, 1, C)
    # sum_acc/max_acc: (block_n, C, lane_block) f32, resident across the HW grid axis.
    k = pl.program_id(1)
    num_chunks = tile_hw // lane_block

    @pl.when(k == 0)
    def _init():
        sum_acc[...] = jnp.zeros_like(sum_acc)
        max_acc[...] = jnp.full_like(max_acc, -jnp.inf)

    def _accumulate(tile_base):
        # tile_base: static element offset of this tile along HW, or None if every
        # position in the tile is valid (no masking).
        s = sum_acc[...]
        m = max_acc[...]
        for j in range(num_chunks):
            off = j * lane_block
            if tile_base is not None and tile_base + off >= hw_total:
                break  # chunk entirely out of range (statically known)
            chunk = x_ref[:, :, off:off + lane_block].astype(jnp.float32)
            if tile_base is not None and tile_base + off + lane_block > hw_total:
                n_valid = hw_total - (tile_base + off)          # static
                lane = lax.broadcasted_iota(jnp.int32, chunk.shape, 2)
                valid = lane < n_valid
                s = s + jnp.where(valid, chunk, 0.0)
                m = jnp.maximum(m, jnp.where(valid, chunk, -jnp.inf))
            else:
                s = s + chunk                 # pure VALU adds/maxes in the hot path
                m = jnp.maximum(m, chunk)
        sum_acc[...] = s
        max_acc[...] = m

    last_base = (grid_hw - 1) * tile_hw
    last_is_partial = (hw_total - last_base) < tile_hw          # static python bool

    if not last_is_partial:
        _accumulate(None)                     # no masking anywhere
    elif grid_hw == 1:
        _accumulate(0)
    else:
        @pl.when(k < grid_hw - 1)
        def _full_tiles():
            _accumulate(None)                 # unmasked steady state

        @pl.when(k == grid_hw - 1)
        def _partial_tile():
            _accumulate(last_base)            # masking only on the last tile

    @pl.when(k == grid_hw - 1)
    def _finalize():
        # One cross-lane (XLU) pass: collapse the lane-partials, then the fused MLP.
        avg = jnp.sum(sum_acc[...], axis=2) * (1.0 / float(hw_total))   # (block_n, C)
        mx = jnp.max(max_acc[...], axis=2)                              # (block_n, C)
        pooled = jnp.concatenate([avg, mx], axis=0)                     # (2*block_n, C)
        w1t = w1t_ref[...]        # native dtype; MXU accumulates in f32
        w2t = w2t_ref[...]
        h = jnp.maximum(
            jnp.dot(pooled.astype(w1t.dtype), w1t,
                    preferred_element_type=jnp.float32), 0.0)           # Conv1x1 + ReLU
        y = jnp.dot(h.astype(w2t.dtype), w2t,
                    preferred_element_type=jnp.float32)                 # Conv1x1
        out = y[:block_n] + y[block_n:]                                 # avg + max branch
        res = jax.nn.sigmoid(out).astype(out_ref.dtype)                 # (block_n, C)
        out_ref[...] = res.reshape(out_ref.shape)


def _vmem_limit_bytes():
    """Per-generation scoped-VMEM budget: ~3/4 of physical VMEM, capped at 96 MiB
    (=> ~96 MiB on v5e/v6e's 128 MiB, ~48 MiB on v7x's 64 MiB).  A conservative
    48 MiB fallback fits every generation if the query is unavailable."""
    try:
        cap = int(pltpu.get_tpu_info().vmem_capacity_bytes)
    except Exception:
        cap = 0
    if cap <= 0:
        return 48 << 20
    return max(32 << 20, min(cap * 3 // 4, 96 << 20))


def channel_attention(x, w1, w2, *, tile_hw=None, block_n=None):
    """x: (N, C, H, W) NCHW; w1: (C_mid, C); w2: (C, C_mid). Returns (N, C, 1, 1)."""
    n, c, h, w = x.shape
    hw = h * w
    c_mid = w1.shape[0]
    itemsize = jnp.dtype(x.dtype).itemsize

    # Layout plumbing that is FREE on HBM: NCHW -> (N, C, HW) is a pure reshape, so HW
    # lands on the lane axis and C (full extent) on sublanes.  Only the tiny weight
    # matrices get transposed.
    x_r = x.reshape(n, c, hw)
    w1t = jnp.transpose(w1)        # (C, C_mid)
    w2t = jnp.transpose(w2)        # (C_mid, C)

    vmem_limit = _vmem_limit_bytes()
    # Per-buffer x-tile target: ~1/12 of the budget (double-buffered x tiles, weight
    # buffers, scratch, headroom), clamped to [1 MiB, 8 MiB].
    tile_target = max(1 << 20, min(8 << 20, vmem_limit // 12))

    if block_n is None:
        # Keep >= 2 N-blocks so the "parallel" axis shards across both v7x TCs.
        block_n = max(1, min(8, pl.cdiv(n, 2)))
        # Huge-C guard: one 128-lane chunk must stay inside the tile budget.
        while block_n > 1 and block_n * c * 128 * itemsize > tile_target:
            block_n //= 2
    block_n = max(1, min(int(block_n), n))
    grid_n = pl.cdiv(n, block_n)

    max_chunks = 64                          # bounds the statically unrolled chunk loop
    if hw >= 128:
        lane_block = 128
        max_tile_hw = (hw // 128) * 128      # <= hw, so blocks never exceed the array
        if tile_hw is None:
            chunk_bytes = block_n * c * 128 * itemsize
            n_chunks = max(1, tile_target // max(chunk_bytes, 1))
        else:
            n_chunks = max(1, int(tile_hw) // 128)
        n_chunks = min(n_chunks, max_chunks, max_tile_hw // 128)
        tile_hw = n_chunks * 128
    else:
        # Tiny feature maps: take the whole (non-128-aligned) extent as one block.
        lane_block = hw
        tile_hw = hw
    grid_hw = pl.cdiv(hw, tile_hw)

    kernel = functools.partial(
        _channel_attention_kernel,
        hw_total=hw, tile_hw=tile_hw, lane_block=lane_block,
        grid_hw=grid_hw, block_n=block_n)

    out = pl.pallas_call(
        kernel,
        out_shape=jax.ShapeDtypeStruct((n, 1, c), x.dtype),
        grid_spec=pltpu.PrefetchScalarGridSpec(
            num_scalar_prefetch=0,
            grid=(grid_n, grid_hw),
            in_specs=[
                pl.BlockSpec((block_n, c, tile_hw), lambda i, k: (i, 0, k)),
                # Constant index_map: Pallas only copies the weights in once.
                # TODO(synk): for very large C, pass bf16 weights (halves the weight
                # VMEM footprint); single-buffering them would halve it again.
                pl.BlockSpec((c, c_mid), lambda i, k: (0, 0)),
                pl.BlockSpec((c_mid, c), lambda i, k: (0, 0)),
            ],
            out_specs=pl.BlockSpec((block_n, 1, c), lambda i, k: (i, 0, 0)),
            scratch_shapes=[
                pltpu.VMEM((block_n, c, lane_block), jnp.float32),   # lane-partial sums
                pltpu.VMEM((block_n, c, lane_block), jnp.float32),   # lane-partial maxes
            ],
        ),
        compiler_params=pltpu.CompilerParams(
            dimension_semantics=("parallel", "arbitrary"),
            vmem_limit_bytes=vmem_limit,
        ),
    )(x_r, w1t, w2t)
    return out.reshape(n, c, 1, 1)


def channel_attention_ref(x, w1, w2):
    # Pure-JAX reference mirroring the PyTorch forward.
    avg = jnp.mean(x, axis=(2, 3))  # (N, C)
    mx = jnp.max(x, axis=(2, 3))    # (N, C)

    def fc(v):
        return jnp.maximum(v @ w1.T, 0.0) @ w2.T

    return jax.nn.sigmoid(fc(avg) + fc(mx))[:, :, None, None]


if __name__ == "__main__":
    key = jax.random.PRNGKey(0)

    # --- primary check: small shapes consistent with the module -------------
    N, C, H, W = 2, 4, 16, 16
    reduction = 1            # required for the module-as-written to type-check
    C_mid = C // reduction

    kx, k1, k2, kx2, k3, k4 = jax.random.split(key, 6)
    x = jax.random.normal(kx, (N, C, H, W), dtype=jnp.float32)
    # Conv2d(C, C_mid, 1, bias=False).weight -> (C_mid, C) after squeezing 1x1.
    w1 = jax.random.normal(k1, (C_mid, C), dtype=jnp.float32) * 0.2
    # Conv2d(C, C, 1, bias=False).weight     -> (C, C) after squeezing 1x1.
    w2 = jax.random.normal(k2, (C, C_mid), dtype=jnp.float32) * 0.2

    out = jax.block_until_ready(channel_attention(x, w1, w2))
    ref = channel_attention_ref(x, w1, w2)
    assert out.shape == (N, C, 1, 1)
    assert jnp.allclose(out, ref, atol=1e-5, rtol=1e-5), "mismatch vs JAX reference"

    # --- secondary check: tiled HW grid + masked (partial) last tile ---------
    N2, C2, H2, W2 = 2, 128, 33, 33          # H*W = 1089: two 512-tiles + 65-valid tail
    x2 = jax.random.normal(kx2, (N2, C2, H2, W2), dtype=jnp.float32)
    w1b = jax.random.normal(k3, (C2, C2), dtype=jnp.float32) * 0.05
    w2b = jax.random.normal(k4, (C2, C2), dtype=jnp.float32) * 0.05

    out2 = jax.block_until_ready(channel_attention(x2, w1b, w2b, tile_hw=512))
    ref2 = channel_attention_ref(x2, w1b, w2b)
    assert out2.shape == (N2, C2, 1, 1)
    assert jnp.allclose(out2, ref2, atol=1e-4, rtol=1e-4), "mismatch (tiled path)"

    print("KERNEL_OK")
</pallas_src>

<mosaic_0001>
module attributes {stable_mosaic.version = 11 : i64} {
  func.func @_channel_attention_kernel(%arg0: i32, %arg1: i32, %arg2: memref<1x4x256xf32, #tpu.memory_space<vmem>>, %arg3: memref<4x4xf32, #tpu.memory_space<vmem>>, %arg4: memref<4x4xf32, #tpu.memory_space<vmem>>, %arg5: memref<1x1x4xf32, #tpu.memory_space<vmem>>, %arg6: memref<1x4x128xf32, #tpu.memory_space<vmem>>, %arg7: memref<1x4x128xf32, #tpu.memory_space<vmem>>) attributes {dimension_semantics = [#tpu.dimension_semantics<parallel>, #tpu.dimension_semantics<arbitrary>], iteration_bounds = array<i64: 2, 1>, scalar_prefetch = 0 : i64, scratch_operands = 2 : i64, tpu.core_type = #tpu.core_type<tc>, window_params = [{transform_indices = @transform_0, window_bounds = array<i64: 1, 4, 256>}, {pipeline_mode = #tpu.pipeline_mode<synchronous>, transform_indices = @transform_1, window_bounds = array<i64: 4, 4>}, {pipeline_mode = #tpu.pipeline_mode<synchronous>, transform_indices = @transform_2, window_bounds = array<i64: 4, 4>}, {transform_indices = @transform_3, window_bounds = array<i64: 1, 1, 4>}]} {
    %c0_i32 = arith.constant 0 : i32
    %0 = arith.cmpi eq, %arg1, %c0_i32 : i32
    %1 = arith.extui %0 : i1 to i32
    %c0_i32_0 = arith.constant 0 : i32
    %2 = arith.cmpi ne, %1, %c0_i32_0 : i32
    scf.if %2 {
      %cst = arith.constant 0.000000e+00 : f32
      %16 = vector.broadcast %cst : f32 to vector<1x4x128xf32>
      %c0_19 = arith.constant 0 : index
      %c0_20 = arith.constant 0 : index
      %c0_21 = arith.constant 0 : index
      %17 = vector.load %arg6[%c0_19, %c0_20, %c0_21] : memref<1x4x128xf32, #tpu.memory_space<vmem>>, vector<1x4x128xf32>
      tpu.vector_store %arg6[%c0_19, %c0_20, %c0_21], %16 {strides = array<i32>} : memref<1x4x128xf32, #tpu.memory_space<vmem>>, vector<1x4x128xf32>,
      %cst_22 = arith.constant 0xFF800000 : f32
      %18 = vector.broadcast %cst_22 : f32 to vector<1x4x128xf32>
      %c0_23 = arith.constant 0 : index
      %c0_24 = arith.constant 0 : index
      %c0_25 = arith.constant 0 : index
      %19 = vector.load %arg7[%c0_23, %c0_24, %c0_25] : memref<1x4x128xf32, #tpu.memory_space<vmem>>, vector<1x4x128xf32>
      tpu.vector_store %arg7[%c0_23, %c0_24, %c0_25], %18 {strides = array<i32>} : memref<1x4x128xf32, #tpu.memory_space<vmem>>, vector<1x4x128xf32>,
    } else {
    }
    %c0 = arith.constant 0 : index
    %c0_1 = arith.constant 0 : index
    %c0_2 = arith.constant 0 : index
    %3 = vector.load %arg6[%c0, %c0_1, %c0_2] : memref<1x4x128xf32, #tpu.memory_space<vmem>>, vector<1x4x128xf32>
    %c0_3 = arith.constant 0 : index
    %c0_4 = arith.constant 0 : index
    %c0_5 = arith.constant 0 : index
    %4 = vector.load %arg7[%c0_3, %c0_4, %c0_5] : memref<1x4x128xf32, #tpu.memory_space<vmem>>, vector<1x4x128xf32>
    %c0_6 = arith.constant 0 : index
    %c0_7 = arith.constant 0 : index
    %c0_8 = arith.constant 0 : index
    %5 = vector.load %arg2[%c0_6, %c0_7, %c0_8] : memref<1x4x256xf32, #tpu.memory_space<vmem>>, vector<1x4x128xf32>
    %6 = arith.addf %3, %5 : vector<1x4x128xf32>
    %7 = arith.maximumf %4, %5 : vector<1x4x128xf32>
    %c0_9 = arith.constant 0 : index
    %c0_10 = arith.constant 0 : index
    %c128 = arith.constant 128 : index
    %8 = vector.load %arg2[%c0_9, %c0_10, %c128] : memref<1x4x256xf32, #tpu.memory_space<vmem>>, vector<1x4x128xf32>
    %9 = arith.addf %6, %8 : vector<1x4x128xf32>
    %10 = arith.maximumf %7, %8 : vector<1x4x128xf32>
    %c0_11 = arith.constant 0 : index
    %c0_12 = arith.constant 0 : index
    %c0_13 = arith.constant 0 : index
    %11 = vector.load %arg6[%c0_11, %c0_12, %c0_13] : memref<1x4x128xf32, #tpu.memory_space<vmem>>, vector<1x4x128xf32>
    tpu.vector_store %arg6[%c0_11, %c0_12, %c0_13], %9 {strides = array<i32>} : memref<1x4x128xf32, #tpu.memory_space<vmem>>, vector<1x4x128xf32>,
    %c0_14 = arith.constant 0 : index
    %c0_15 = arith.constant 0 : index
    %c0_16 = arith.constant 0 : index
    %12 = vector.load %arg7[%c0_14, %c0_15, %c0_16] : memref<1x4x128xf32, #tpu.memory_space<vmem>>, vector<1x4x128xf32>
    tpu.vector_store %arg7[%c0_14, %c0_15, %c0_16], %10 {strides = array<i32>} : memref<1x4x128xf32, #tpu.memory_space<vmem>>, vector<1x4x128xf32>,
    %c0_i32_17 = arith.constant 0 : i32
    %13 = arith.cmpi eq, %arg1, %c0_i32_17 : i32
    %14 = arith.extui %13 : i1 to i32
    %c0_i32_18 = arith.constant 0 : i32
    %15 = arith.cmpi ne, %14, %c0_i32_18 : i32
    scf.if %15 {
      %c0_19 = arith.constant 0 : index
      %c0_20 = arith.constant 0 : index
      %c0_21 = arith.constant 0 : index
      %16 = vector.load %arg6[%c0_19, %c0_20, %c0_21] : memref<1x4x128xf32, #tpu.memory_space<vmem>>, vector<1x4x128xf32>
      %cst = arith.constant dense<0.000000e+00> : vector<1x4xf32>
      %17 = vector.multi_reduction <add>, %16, %cst [2] : vector<1x4x128xf32> to vector<1x4xf32>
      %cst_22 = arith.constant 3.906250e-03 : f32
      %18 = vector.broadcast %cst_22 : f32 to vector<1x4xf32>
      %19 = arith.mulf %17, %18 : vector<1x4xf32>
      %c0_23 = arith.constant 0 : index
      %c0_24 = arith.constant 0 : index
      %c0_25 = arith.constant 0 : index
      %20 = vector.load %arg7[%c0_23, %c0_24, %c0_25] : memref<1x4x128xf32, #tpu.memory_space<vmem>>, vector<1x4x128xf32>
      %cst_26 = arith.constant dense<0xFF800000> : vector<1x4xf32>
      %21 = vector.multi_reduction <maximumf>, %20, %cst_26 [2] : vector<1x4x128xf32> to vector<1x4xf32>
      %22 = tpu.concatenate %19, %21 in 0 : vector<1x4xf32>, vector<1x4xf32> -> vector<2x4xf32>
      %c0_27 = arith.constant 0 : index
      %c0_28 = arith.constant 0 : index
      %23 = vector.load %arg3[%c0_27, %c0_28] : memref<4x4xf32, #tpu.memory_space<vmem>>, vector<4x4xf32>
      %c0_29 = arith.constant 0 : index
      %c0_30 = arith.constant 0 : index
      %24 = vector.load %arg4[%c0_29, %c0_30] : memref<4x4xf32, #tpu.memory_space<vmem>>, vector<4x4xf32>
      %cst_31 = arith.constant dense<0.000000e+00> : vector<2x4xf32>
      %25 = tpu.matmul %22, %23, %cst_31 {dimension_numbers = #tpu.dot_dimension_numbers<[1], [0], [0], [1], [0, 0, 1, 1], [], []>} : vector<2x4xf32>, vector<4x4xf32>, vector<2x4xf32> -> vector<2x4xf32>
      %cst_32 = arith.constant 0.000000e+00 : f32
      %26 = vector.broadcast %cst_32 : f32 to vector<2x4xf32>
      %27 = arith.maximumf %25, %26 : vector<2x4xf32>
      %cst_33 = arith.constant dense<0.000000e+00> : vector<2x4xf32>
      %28 = tpu.matmul %27, %24, %cst_33 {dimension_numbers = #tpu.dot_dimension_numbers<[1], [0], [0], [1], [0, 0, 1, 1], [], []>} : vector<2x4xf32>, vector<4x4xf32>, vector<2x4xf32> -> vector<2x4xf32>
      %29 = vector.extract_strided_slice %28 {offsets = [0, 0], sizes = [1, 4], strides = [1, 1]} : vector<2x4xf32> to vector<1x4xf32>
      %30 = vector.extract_strided_slice %28 {offsets = [1, 0], sizes = [1, 4], strides = [1, 1]} : vector<2x4xf32> to vector<1x4xf32>
      %31 = arith.addf %29, %30 : vector<1x4xf32>
      %32 = arith.negf %31 : vector<1x4xf32>
      %33 = math.exp %32 : vector<1x4xf32>
      %cst_34 = arith.constant 1.000000e+00 : f32
      %34 = vector.broadcast %cst_34 : f32 to vector<1x4xf32>
      %35 = arith.addf %34, %33 : vector<1x4xf32>
      %36 = arith.divf %34, %35 : vector<1x4xf32>
      %37 = vector.shape_cast %36 : vector<1x4xf32> to vector<1x1x4xf32>
      %c0_35 = arith.constant 0 : index
      %c0_36 = arith.constant 0 : index
      %c0_37 = arith.constant 0 : index
      %38 = vector.load %arg5[%c0_35, %c0_36, %c0_37] : memref<1x1x4xf32, #tpu.memory_space<vmem>>, vector<1x1x4xf32>
      tpu.vector_store %arg5[%c0_35, %c0_36, %c0_37], %37 {strides = array<i32>} : memref<1x1x4xf32, #tpu.memory_space<vmem>>, vector<1x1x4xf32>,
    } else {
    }
    return
  }
  func.func @transform_0(%arg0: i32, %arg1: i32) -> (i32, i32, i32) {
    %c0_i32 = arith.constant 0 : i32
    %c0_i32_0 = arith.constant 0 : i32
    return %arg0, %c0_i32, %arg1 : i32, i32, i32
  }
  func.func @transform_1(%arg0: i32, %arg1: i32) -> (i32, i32) {
    %c0_i32 = arith.constant 0 : i32
    %c0_i32_0 = arith.constant 0 : i32
    %c0_i32_1 = arith.constant 0 : i32
    return %c0_i32, %c0_i32_0 : i32, i32
  }
  func.func @transform_2(%arg0: i32, %arg1: i32) -> (i32, i32) {
    %c0_i32 = arith.constant 0 : i32
    %c0_i32_0 = arith.constant 0 : i32
    %c0_i32_1 = arith.constant 0 : i32
    return %c0_i32, %c0_i32_0 : i32, i32
  }
  func.func @transform_3(%arg0: i32, %arg1: i32) -> (i32, i32, i32) {
    %c0_i32 = arith.constant 0 : i32
    %c0_i32_0 = arith.constant 0 : i32
    %c0_i32_1 = arith.constant 0 : i32
    return %arg0, %c0_i32, %c0_i32_0 : i32, i32, i32
  }
}

</mosaic_0001>

<llo_original>
// kernel: tpu_custom_call.1
$region0: #{tpu_custom_call.1}
  #allocation0 [shape = 'u32[]', space=smem, size = 0x4, offset = 0x4, fixed_abs, tag = 'smem constant byte address 0x4 - core index']
  #allocation1 [shape = 'u32[144,128]{1,0:T(1,128)}', space=vmem, size = 0x12000, scoped, tag = 'internal scratch']
  #allocation2 [shape = 'f32[1,4,128]{2,1,0:T(4,128)}', space=vmem, size = 0x800, scoped, tag = 'scratch operand']
  #allocation3 [shape = 'f32[1,4,128]{2,1,0:T(4,128)}', space=vmem, size = 0x800, scoped, tag = 'scratch operand']
  %s0 = inlined_call_operand.hbm [shape: f32[2,4,256], index: 0, kind: input, shape index: {}]
  %s1 = inlined_call_operand.hbm [shape: f32[4,4], index: 1, kind: input, shape index: {}]
  %s2 = inlined_call_operand.vmem [shape: f32[4,4], index: 2, kind: input, shape index: {}]
  %s3 = inlined_call_operand.hbm [shape: f32[2,1,4], index: 3, kind: output, shape index: {}]
  %s4 = sld [smem:[#allocation0]]
  $region61: #{tpu_custom_call.1} parent=0
    _
  %s6 = ssub.s32 1, %s4
  %s7 = scalar_select 0, %s6, %s4
  $region1: #{tpu_custom_call.1} parent=0
    #allocation4 [shape = 'u8[8192]{0}', space=vmem, size = 0x2000, scoped, tag = 'input window, operand 0']
    #allocation5 [shape = 's32[2]{0}', space=sflag, size = 0x8, scoped, tag = 'scoped memory for tpu_custom_call.1']
    #allocation6 [shape = 's32[2]{0}', space=sflag, size = 0x8, scoped, tag = 'scoped memory for tpu_custom_call.1']
    #allocation7 [shape = 'u8[2048]{0}', space=vmem, size = 0x800, scoped, tag = 'input window, operand 1, single buffered']
    #allocation8 [shape = 's32[1]{0}', space=sflag, size = 0x4, scoped, tag = 'scoped memory for tpu_custom_call.1']
    #allocation9 [shape = 'u8[1024]{0}', space=vmem, size = 0x400, scoped, tag = 'output window, operand 0']
    %8 = vsyncpa [#allocation5], 0
    %s9 = scalar_lea.sflag [#allocation5], 1
    %10 = vsyncpa %s9, 0
    %11 = vsyncpa [#allocation8], 0
    %12 = vsyncpa [#allocation6], 0
    %s13 = scalar_lea.sflag [#allocation6], 1
    %14 = vsyncpa %s13, 0
    loop: start=0, step=1, limit=4
    $region2: #{tpu_custom_call.1} parent=1 // loop_pre_header
      _
    $region3: #{tpu_custom_call.1} parent=1 // loop_header
      %s16 = sphi 0, %s20
      %p17 = scmp.ge.s32.totalorder %s16, 4
      %s23 = sphi 0, %s35
      %s24 = sphi 0, %s31
      %s25 = sphi 0, %s23
      %s26 = sphi 0, %s24
      %s27 = sphi 0, %s25
      %s28 = sphi 0, %s26
      %s40 = sphi 0, %s42
      %s43 = sphi 0, %s40
      %s44 = sphi 0, %s43
      %s60 = sphi 0, %s44
      %s64 = sphi 0, %s64
      %s66 = sphi 0, %s64
      %s67 = sphi 0, %s66
      %s81 = sphi 0, %s67
      %s85 = sphi 0, %s85
      %s87 = sphi 0, %s85
      %s88 = sphi 0, %s87
      %s102 = sphi 0, %s88
      %s108 = sphi 0, %s110
      %s111 = sphi 0, %s108
      %s112 = sphi 0, %s111
      %s128 = sphi 0, %s112
    $region4: #{tpu_custom_call.1} parent=1 // loop_header_branch
      %19 = sbr.rel (%p17) target = $region8
    $region5: #{tpu_custom_call.1} parent=1 // loop_body
      %s21 = ssub.s32 %s16, 1
      %s22 = ssub.s32 %s16, 2
      %s29 = sadd.s32 1, %s24
      %p30 = scmp.ge.s32.totalorder %s29, 1
      %s31 = scalar_select %p30, 0, %s29
      %s32 = sadd.s32 1, %s23
      %s33 = scalar_select %p30, %s32, %s23
      %p34 = scmp.ge.s32.totalorder %s33, 2
      %s35 = scalar_select %p34, 0, %s33
      %s36 = ssub.s32 %s23, %s35
      %s37 = ssub.s32 %s24, %s31
      %s38 = sor.u32 %s36, %s37
      %p39 = scmp.eq.s32.totalorder %s38, 0
      %s41 = sadd.s32 %s40, 1
      %s42 = scalar_select %p39, %s40, %s41
      %p45 = pneg %p39
      %p46 = scmp.eq.s32.totalorder %s16, 1
      %p47 = por %p45, %p46
      %p48 = scmp.ne.s32.totalorder %s40, %s43
      %p49 = scmp.eq.s32.totalorder %s16, 0
      %p50 = por %p48, %p49
      %p51 = scmp.ne.s32.totalorder %s40, %s43
      %p52 = scmp.eq.s32.totalorder %s21, 1
      %p53 = por %p51, %p52
      %p54 = scmp.ne.s32.totalorder %s43, %s44
      %p55 = scmp.eq.s32.totalorder %s21, 0
      %p56 = por %p54, %p55
      %p57 = scmp.ne.s32.totalorder %s43, %s44
      %p58 = scmp.eq.s32.totalorder %s22, 1
      %p59 = por %p57, %p58
      %p61 = scmp.ne.s32.totalorder %s44, %s60
      %p62 = scmp.eq.s32.totalorder %s22, 0
      %p63 = por %p61, %p62
      %s65 = sadd.s32 %s64, 1
      %p68 = scmp.eq.s32.totalorder %s16, 1
      %p69 = scmp.ne.s32.totalorder %s64, %s66
      %p70 = scmp.eq.s32.totalorder %s16, 0
      %p71 = por %p69, %p70
      %p72 = scmp.ne.s32.totalorder %s64, %s66
      %p73 = scmp.eq.s32.totalorder %s21, 1
      %p74 = por %p72, %p73
      %p75 = scmp.ne.s32.totalorder %s66, %s67
      %p76 = scmp.eq.s32.totalorder %s21, 0
      %p77 = por %p75, %p76
      %p78 = scmp.ne.s32.totalorder %s66, %s67
      %p79 = scmp.eq.s32.totalorder %s22, 1
      %p80 = por %p78, %p79
      %p82 = scmp.ne.s32.totalorder %s67, %s81
      %p83 = scmp.eq.s32.totalorder %s22, 0
      %p84 = por %p82, %p83
      %s86 = sadd.s32 %s85, 1
      %p89 = scmp.eq.s32.totalorder %s16, 1
      %p90 = scmp.ne.s32.totalorder %s85, %s87
      %p91 = scmp.eq.s32.totalorder %s16, 0
      %p92 = por %p90, %p91
      %p93 = scmp.ne.s32.totalorder %s85, %s87
      %p94 = scmp.eq.s32.totalorder %s21, 1
      %p95 = por %p93, %p94
      %p96 = scmp.ne.s32.totalorder %s87, %s88
      %p97 = scmp.eq.s32.totalorder %s21, 0
      %p98 = por %p96, %p97
      %p99 = scmp.ne.s32.totalorder %s87, %s88
      %p100 = scmp.eq.s32.totalorder %s22, 1
      %p101 = por %p99, %p100
      %p103 = scmp.ne.s32.totalorder %s88, %s102
      %p104 = scmp.eq.s32.totalorder %s22, 0
      %p105 = por %p103, %p104
      %s106 = ssub.s32 %s23, %s35
      %p107 = scmp.eq.s32.totalorder %s106, 0
      %s109 = sadd.s32 %s108, 1
      %s110 = scalar_select %p107, %s108, %s109
      %p113 = pneg %p107
      %p114 = scmp.eq.s32.totalorder %s16, 1
      %p115 = por %p113, %p114
      %p116 = scmp.ne.s32.totalorder %s108, %s111
      %p117 = scmp.eq.s32.totalorder %s16, 0
      %p118 = por %p116, %p117
      %p119 = scmp.ne.s32.totalorder %s108, %s111
      %p120 = scmp.eq.s32.totalorder %s21, 1
      %p121 = por %p119, %p120
      %p122 = scmp.ne.s32.totalorder %s111, %s112
      %p123 = scmp.eq.s32.totalorder %s21, 0
      %p124 = por %p122, %p123
      %p125 = scmp.ne.s32.totalorder %s111, %s112
      %p126 = scmp.eq.s32.totalorder %s22, 1
      %p127 = por %p125, %p126
      %p129 = scmp.ne.s32.totalorder %s112, %s128
      %p130 = scmp.eq.s32.totalorder %s22, 0
      %p131 = por %p129, %p130
      %p132 = scmp.le.s32.totalorder 1, %s16
      %p133 = scmp.lt.s32.totalorder %s16, 3
      %p134 = pnand %p132, %p133
      %p135 = pneg %p134
      // Predicated region
      $region9: #{tpu_custom_call.1} parent=5 // pred_check
        _
      $region10: #{tpu_custom_call.1} parent=5 // pred_check_branch
        %137 = sbr.rel (%p134) target = $region12
      $region11: #{tpu_custom_call.1} parent=5 // pred_region
        %s138 = ssub.s32 %s16, 1
        // Predicated region
        $region13: #{tpu_custom_call.1} parent=11 // pred_check
          %p139 = pneg %p77
        $region14: #{tpu_custom_call.1} parent=11 // pred_check_branch
          %141 = sbr.rel (%p139) target = $region16
        $region15: #{tpu_custom_call.1} parent=11 // pred_region
          %s143 = ssub.s32 64, 64
          %144 = vsyncadd [#allocation8], %s143
          %s146 = sshll.u32 [#allocation7], 4
          %s147 = int_to_ptr.vmem [resolvable:$true] %s146
          %149 = dma.hbm_to_vmem [thread:$0]  %s1, 64, %s147, [#allocation8]
        $region16: #{tpu_custom_call.1} parent=11 // pred_fallthru
          _
        // Predicated region
        $region17: #{tpu_custom_call.1} parent=11 // pred_check
          %p150 = pneg %p98
        $region18: #{tpu_custom_call.1} parent=11 // pred_check_branch
          %152 = sbr.rel (%p150) target = $region20
        $region19: #{tpu_custom_call.1} parent=11 // pred_region
          _
        $region20: #{tpu_custom_call.1} parent=11 // pred_fallthru
          _
      $region12: #{tpu_custom_call.1} parent=5 // pred_fallthru
        _
      %p153 = scmp.lt.s32.totalorder %s16, 2
      // Predicated region
      $region21: #{tpu_custom_call.1} parent=5 // pred_check
        %p154 = pneg %p153
      $region22: #{tpu_custom_call.1} parent=5 // pred_check_branch
        %156 = sbr.rel (%p154) target = $region24
      $region23: #{tpu_custom_call.1} parent=5 // pred_region
        // Predicated region
        $region25: #{tpu_custom_call.1} parent=23 // pred_check
          %p157 = pneg %p50
        $region26: #{tpu_custom_call.1} parent=23 // pred_check_branch
          %159 = sbr.rel (%p157) target = $region28
        $region27: #{tpu_custom_call.1} parent=23 // pred_region
          %s160 = sand.u32 %s40, 1
          %s161 = scalar_lea.sflag [#allocation5], %s160
          %s162 = sand.u32 %s40, 1
          %s163 = smul.addr %s162, 8
          %s164 = scalar_lea.vmem [#allocation4], %s163
          %s165 = smul.u32 2, %s24
          %s167 = ssub.s32 128, 128
          %168 = vsyncadd %s161, %s167
          %s169 = smul.addr %s23, 2
          %s170 = sadd.s32 %s165, %s169
          %s171 = smul.addr %s170, 64
          %s172 = scalar_lea.hbm %s0, %s171
          %s174 = sshll.u32 %s164, 4
          %s175 = int_to_ptr.vmem [resolvable:$true] %s174
          %177 = dma.hbm_to_vmem [thread:$0]  %s172, 128, %s175, %s161
        $region28: #{tpu_custom_call.1} parent=23 // pred_fallthru
          _
      $region24: #{tpu_custom_call.1} parent=5 // pred_fallthru
        _
      %p178 = scmp.le.s32.totalorder 1, %s16
      %p179 = scmp.lt.s32.totalorder %s16, 3
      %p180 = pnand %p178, %p179
      %p181 = pneg %p180
      // Predicated region
      $region29: #{tpu_custom_call.1} parent=5 // pred_check
        _
      $region30: #{tpu_custom_call.1} parent=5 // pred_check_branch
        %183 = sbr.rel (%p180) target = $region32
      $region31: #{tpu_custom_call.1} parent=5 // pred_region
        %s184 = ssub.s32 %s16, 1
        %s185 = sand.u32 %s43, 1
        %s186 = scalar_lea.sflag [#allocation5], %s185
        %s187 = sand.u32 %s43, 1
        %s188 = smul.addr %s187, 8
        %s189 = scalar_lea.vmem [#allocation4], %s188
        // Predicated region
        $region33: #{tpu_custom_call.1} parent=31 // pred_check
          %p190 = pneg %p56
        $region34: #{tpu_custom_call.1} parent=31 // pred_check_branch
          %192 = sbr.rel (%p190) target = $region36
        $region35: #{tpu_custom_call.1} parent=31 // pred_region
          %193 = dma.done %s186, 128
        $region36: #{tpu_custom_call.1} parent=31 // pred_fallthru
          _
        // Predicated region
        $region37: #{tpu_custom_call.1} parent=31 // pred_check
          %p194 = pneg %p77
        $region38: #{tpu_custom_call.1} parent=31 // pred_check_branch
          %196 = sbr.rel (%p194) target = $region40
        $region39: #{tpu_custom_call.1} parent=31 // pred_region
          %197 = dma.done [#allocation8], 64
        $region40: #{tpu_custom_call.1} parent=31 // pred_fallthru
          _
        %s198 = sand.u32 %s43, 1
        %s199 = scalar_lea.sflag [#allocation5], %s198
        %s200 = sand.u32 %s43, 1
        %s201 = smul.addr %s200, 8
        %s202 = scalar_lea.vmem [#allocation4], %s201
        %p203 = pneg %p56
        %p204 = pneg %p53
        %p205 = pneg %p77
        %p206 = pneg %p74
        %p207 = pneg %p98
        %p208 = pneg %p95
        %p209 = pneg %p124
        %p210 = pneg %p121
        %s211 = sand.u32 %s111, 1
        %s212 = scalar_lea.sflag [#allocation6], %s211
        %s213 = sand.u32 %s111, 1
        %s214 = scalar_lea.vmem [#allocation9], %s213
        %s215 = smul.u32 2, %s26
        %p216 = scmp.eq.s32.totalorder %s26, 0
        // Predicated region
        $region41: #{tpu_custom_call.1} parent=31 // pred_check
          %p217 = pneg %p216
        $region42: #{tpu_custom_call.1} parent=31 // pred_check_branch
          %219 = sbr.rel (%p217) target = $region44
        $region43: #{tpu_custom_call.1} parent=31 // pred_region
          %220 = vst [vmem:[#allocation2] sm:$0xf] 0.0
          %221 = vst [vmem:[#allocation3] sm:$0xf] -inf
        $region44: #{tpu_custom_call.1} parent=31 // pred_fallthru
          _
        %v222 = vld [vmem:[#allocation2] sm:$0xf]
        %v223 = vld [vmem:[#allocation3] sm:$0xf]
        %v224 = vld [vmem:[%s189] sm:$0xf]
        %v225 = vadd.f32 %v222, %v224
        %v226 = vmax.f32 %v223, %v224
        %v227 = vld [vmem:[%s189 + $0x4] sm:$0xf]
        %v228 = vadd.f32 %v225, %v227
        %v229 = vmax.f32 %v226, %v227
        %230 = vst [vmem:[#allocation2] sm:$0xf] %v228
        %231 = vst [vmem:[#allocation3] sm:$0xf] %v229
        // Predicated region
        $region45: #{tpu_custom_call.1} parent=31 // pred_check
          %p232 = pneg %p216
        $region46: #{tpu_custom_call.1} parent=31 // pred_check_branch
          %234 = sbr.rel (%p232) target = $region48
        $region47: #{tpu_custom_call.1} parent=31 // pred_region
          %v235 = vld [vmem:[#allocation2] sm:$0xf]
          %vm236 = vcmask 1043456
          %v237 = vsel %vm236, %v235, 0.0
          %238 = vadd.xlane.f32.xlu0 %v237
          %v239 = vpop.xlane.xlu0 %238
          %v240 = vmul.f32 %v239, 0.00390625
          %v241 = vld [vmem:[#allocation3] sm:$0xf]
          %v242 = vsel %vm236, %v241, -inf
          %243 = vmax.xlane.f32.xlu0 %v242
          %v244 = vpop.xlane.xlu0 %243
          %v246 = vlaneseq
          %v247 = vand.u32 %v246, 127
          %v248 = vlaneseq
          %v249 = vshrl.u32 %v248, 7
          %v250 = vsub.s32 %v247, %v249
          %v251 = vrot.slane %v240, %v250
          %v254 = vlaneseq
          %v255 = vshrl.u32 %v254, 7
          %v256 = vsub.s32 %v247, %v255
          %v257 = vrot.slane %v244, %v256
          %vm259 = vcmask 1040384
          %v260 = vsel %vm259, %v251, %v257
          %v261 = vld [vmem:[#allocation7] sm:$0xf]
          %v262 = vld [vmem:[%s2] sm:$0xf]
          %vm263 = vcmask 31744
          %v265 = vsel %vm263, %v260, 0
          %v268 = vsel %vm236, %v261, 0
          %270 = vmatprep.subr.mxu0 0.0
          %271 = vmatpush1.msra.mxu0 %v268
          %272 = vmatprep.subr.mxu0 0.0
          %273 = vmatpush1.msra.mxu0 0.0
          %274 = vmatprep.subr.mxu0 0.0
          %275 = vmatpush1.msra.mxu0 0.0
          %276 = vmatprep.subr.mxu0 0.0
          %277 = vmatpush1.msra.mxu0 0.0
          %278 = vmatprep.subr.mxu0 0.0
          %279 = vmatpush1.msra.mxu0 0.0
          %280 = vmatprep.subr.mxu0 0.0
          %281 = vmatpush1.msra.mxu0 0.0
          %282 = vmatprep.subr.mxu0 0.0
          %283 = vmatpush1.msra.mxu0 0.0
          %284 = vmatprep.subr.mxu0 0.0
          %285 = vmatpush1.msra.mxu0 0.0
          %286 = vmatprep.subr.mxu0 0.0
          %287 = vmatpush1.msra.mxu0 0.0
          %288 = vmatprep.subr.mxu0 0.0
          %289 = vmatpush1.msra.mxu0 0.0
          %290 = vmatprep.subr.mxu0 0.0
          %291 = vmatpush1.msra.mxu0 0.0
          %292 = vmatprep.subr.mxu0 0.0
          %293 = vmatpush1.msra.mxu0 0.0
          %294 = vmatprep.subr.mxu0 0.0
          %295 = vmatpush1.msra.mxu0 0.0
          %296 = vmatprep.subr.mxu0 0.0
          %297 = vmatpush1.msra.mxu0 0.0
          %298 = vmatprep.subr.mxu0 0.0
          %299 = vmatpush1.msra.mxu0 0.0
          %300 = vmatprep.subr.mxu0 0.0
          %301 = vmatpush1.msra.mxu0 0.0
          %302 = vmatprep.subr.mxu0 0.0
          %303 = vmatpush1.msra.mxu0 0.0
          %304 = vmatprep.subr.mxu0 0.0
          %305 = vmatpush1.msra.mxu0 0.0
          %306 = vmatprep.subr.mxu0 0.0
          %307 = vmatpush1.msra.mxu0 0.0
          %308 = vmatprep.subr.mxu0 0.0
          %309 = vmatpush1.msra.mxu0 0.0
          %310 = vmatprep.subr.mxu0 0.0
          %311 = vmatpush1.msra.mxu0 0.0
          %312 = vmatprep.subr.mxu0 0.0
          %313 = vmatpush1.msra.mxu0 0.0
          %314 = vmatprep.subr.mxu0 0.0
          %315 = vmatpush1.msra.mxu0 0.0
          %316 = vmatprep.subr.mxu0 0.0
          %317 = vmatpush1.msra.mxu0 0.0
          %318 = vmatprep.subr.mxu0 0.0
          %319 = vmatpush1.msra.mxu0 0.0
          %320 = vmatprep.subr.mxu0 0.0
          %321 = vmatpush1.msra.mxu0 0.0
          %322 = vmatprep.subr.mxu0 0.0
          %323 = vmatpush1.msra.mxu0 0.0
          %324 = vmatprep.subr.mxu0 0.0
          %325 = vmatpush1.msra.mxu0 0.0
          %326 = vmatprep.subr.mxu0 0.0
          %327 = vmatpush1.msra.mxu0 0.0
          %328 = vmatprep.subr.mxu0 0.0
          %329 = vmatpush1.msra.mxu0 0.0
          %330 = vmatprep.subr.mxu0 0.0
          %331 = vmatpush1.msra.mxu0 0.0
          %332 = vmatprep.subr.mxu0 0.0
          %333 = vmatpush1.msra.mxu0 0.0
          %334 = vmatprep.mubr.f32.mxu0 0.0
          %335 = vmatmul.mubr.f32.gmra.mrb[0].mxu0 %v265
          %v336 = vpop.f32.mrb[0].mxu0
          %v337 = vadd.f32 0.0, %v336
          %v338 = vpop.f32.mrb[0].mxu0
          %339 = vdwg.mxu0
          %v340 = vmax.f32 %v337, 0.0
          %v342 = vsel %vm263, %v340, 0
          %v345 = vsel %vm236, %v262, 0
          %347 = vmatprep.subr.mxu0 0.0
          %348 = vmatpush1.msra.mxu0 %v345
          %349 = vmatprep.subr.mxu0 0.0
          %350 = vmatpush1.msra.mxu0 0.0
          %351 = vmatprep.subr.mxu0 0.0
          %352 = vmatpush1.msra.mxu0 0.0
          %353 = vmatprep.subr.mxu0 0.0
          %354 = vmatpush1.msra.mxu0 0.0
          %355 = vmatprep.subr.mxu0 0.0
          %356 = vmatpush1.msra.mxu0 0.0
          %357 = vmatprep.subr.mxu0 0.0
          %358 = vmatpush1.msra.mxu0 0.0
          %359 = vmatprep.subr.mxu0 0.0
          %360 = vmatpush1.msra.mxu0 0.0
          %361 = vmatprep.subr.mxu0 0.0
          %362 = vmatpush1.msra.mxu0 0.0
          %363 = vmatprep.subr.mxu0 0.0
          %364 = vmatpush1.msra.mxu0 0.0
          %365 = vmatprep.subr.mxu0 0.0
          %366 = vmatpush1.msra.mxu0 0.0
          %367 = vmatprep.subr.mxu0 0.0
          %368 = vmatpush1.msra.mxu0 0.0
          %369 = vmatprep.subr.mxu0 0.0
          %370 = vmatpush1.msra.mxu0 0.0
          %371 = vmatprep.subr.mxu0 0.0
          %372 = vmatpush1.msra.mxu0 0.0
          %373 = vmatprep.subr.mxu0 0.0
          %374 = vmatpush1.msra.mxu0 0.0
          %375 = vmatprep.subr.mxu0 0.0
          %376 = vmatpush1.msra.mxu0 0.0
          %377 = vmatprep.subr.mxu0 0.0
          %378 = vmatpush1.msra.mxu0 0.0
          %379 = vmatprep.subr.mxu0 0.0
          %380 = vmatpush1.msra.mxu0 0.0
          %381 = vmatprep.subr.mxu0 0.0
          %382 = vmatpush1.msra.mxu0 0.0
          %383 = vmatprep.subr.mxu0 0.0
          %384 = vmatpush1.msra.mxu0 0.0
          %385 = vmatprep.subr.mxu0 0.0
          %386 = vmatpush1.msra.mxu0 0.0
          %387 = vmatprep.subr.mxu0 0.0
          %388 = vmatpush1.msra.mxu0 0.0
          %389 = vmatprep.subr.mxu0 0.0
          %390 = vmatpush1.msra.mxu0 0.0
          %391 = vmatprep.subr.mxu0 0.0
          %392 = vmatpush1.msra.mxu0 0.0
          %393 = vmatprep.subr.mxu0 0.0
          %394 = vmatpush1.msra.mxu0 0.0
          %395 = vmatprep.subr.mxu0 0.0
          %396 = vmatpush1.msra.mxu0 0.0
          %397 = vmatprep.subr.mxu0 0.0
          %398 = vmatpush1.msra.mxu0 0.0
          %399 = vmatprep.subr.mxu0 0.0
          %400 = vmatpush1.msra.mxu0 0.0
          %401 = vmatprep.subr.mxu0 0.0
          %402 = vmatpush1.msra.mxu0 0.0
          %403 = vmatprep.subr.mxu0 0.0
          %404 = vmatpush1.msra.mxu0 0.0
          %405 = vmatprep.subr.mxu0 0.0
          %406 = vmatpush1.msra.mxu0 0.0
          %407 = vmatprep.subr.mxu0 0.0
          %408 = vmatpush1.msra.mxu0 0.0
          %409 = vmatprep.subr.mxu0 0.0
          %410 = vmatpush1.msra.mxu0 0.0
          %411 = vmatprep.mubr.f32.mxu0 0.0
          %412 = vmatmul.mubr.f32.gmra.mrb[0].mxu0 %v342
          %v413 = vpop.f32.mrb[0].mxu0
          %v414 = vadd.f32 0.0, %v413
          %v415 = vpop.f32.mrb[0].mxu0
          %416 = vdwg.mxu0
          %v418 = vrot.slane %v414, 1
          %v420 = vadd.f32 %v414, %v418
          %v421 = vxor.u32 %v420, 2147483648
          %v422 = vmul.f32 %v421, 1.442695
          %v423 = vpow.pop %v422
          %v424 = vadd.f32 %v423, 1.0
          %v425 = vrcp.pop %v424
          %v426 = vmul.f32 1.0, %v425
          %vm427 = vcmask 24576
          %428 = vst.msk [vmem:[%s214] sm:$0x1] %vm427, %v426
        $region48: #{tpu_custom_call.1} parent=31 // pred_fallthru
          _
        %s429 = sand.u32 %s111, 1
        %s430 = scalar_lea.sflag [#allocation6], %s429
        %s431 = sand.u32 %s111, 1
        %s432 = scalar_lea.vmem [#allocation9], %s431
        // Predicated region
        $region49: #{tpu_custom_call.1} parent=31 // pred_check
          %p433 = pneg %p121
        $region50: #{tpu_custom_call.1} parent=31 // pred_check_branch
          %435 = sbr.rel (%p433) target = $region52
        $region51: #{tpu_custom_call.1} parent=31 // pred_region
          %s437 = ssub.s32 16, 16
          %438 = vsyncadd %s430, %s437
          %s439 = smul.addr %s25, 16
          %s440 = scalar_lea.hbm %s3, %s439
          %s442 = sshll.u32 %s432, 4
          %s443 = int_to_ptr.vmem [resolvable:$true] %s442
          %445 = dma.vmem_to_hbm [thread:$0]  %s443, 16, %s440, %s430
        $region52: #{tpu_custom_call.1} parent=31 // pred_fallthru
          _
      $region32: #{tpu_custom_call.1} parent=5 // pred_fallthru
        _
      %p446 = scmp.le.s32.totalorder 2, %s16
      // Predicated region
      $region53: #{tpu_custom_call.1} parent=5 // pred_check
        %p447 = pneg %p446
      $region54: #{tpu_custom_call.1} parent=5 // pred_check_branch
        %449 = sbr.rel (%p447) target = $region56
      $region55: #{tpu_custom_call.1} parent=5 // pred_region
        %s450 = ssub.s32 %s16, 2
        // Predicated region
        $region57: #{tpu_custom_call.1} parent=55 // pred_check
          %p451 = pneg %p127
        $region58: #{tpu_custom_call.1} parent=55 // pred_check_branch
          %453 = sbr.rel (%p451) target = $region60
        $region59: #{tpu_custom_call.1} parent=55 // pred_region
          %s454 = sand.u32 %s112, 1
          %s455 = scalar_lea.sflag [#allocation6], %s454
          %s456 = sand.u32 %s112, 1
          %s457 = scalar_lea.vmem [#allocation9], %s456
          %458 = dma.done %s455, 16
        $region60: #{tpu_custom_call.1} parent=55 // pred_fallthru
          _
      $region56: #{tpu_custom_call.1} parent=5 // pred_fallthru
        _
    $region6: #{tpu_custom_call.1} parent=1 // loop_footer
      %s20 = sadd.s32 1, %s16
    $region7: #{tpu_custom_call.1} parent=1 // loop_footer_branch
      %15 = sbr.rel target = $region3
    $region8: #{tpu_custom_call.1} parent=1 // loop_exit
      _
    %459 = vsyncpa [#allocation5], 1
    %s460 = scalar_lea.sflag [#allocation5], 1
    %461 = vsyncpa %s460, 1
    %462 = vsyncpa [#allocation8], 1
    %463 = vsyncpa [#allocation6], 1
    %s464 = scalar_lea.sflag [#allocation6], 1
    %465 = vsyncpa %s464, 1

</llo_original>
